<compile_context>
chip_gen: v7x
topology: tpu7x:2x2x1
jax: 0.10.0
libtpu: 0.0.40
codegen_flags: <defaults>
</compile_context>

<pallas_src>
import functools

import jax
import jax.numpy as jnp
from jax import lax
from jax.experimental import pallas as pl
from jax.experimental.pallas import tpu as pltpu


def _field_cost_kernel(cs_ref, ds_ref, cs_sq_ref, ds_sq_ref, out_ref):
    """One (tile_n, tile_m) block of the pairwise squared-L2 cost matrix.

    cs_ref   : (tn, D) VMEM tile of candidate field vectors
    ds_ref   : (tm, D) VMEM tile of detection field vectors
    cs_sq_ref: (tn, 1) precomputed |cs_n|^2 (f32)
    ds_sq_ref: (1, tm) precomputed |ds_m|^2 (f32)
    out_ref  : (tn, tm) cost tile (f32)
    """
    # MXU: contract on the feature dim of both operands directly (no ds.T),
    # native input dtype, f32 accumulation.
    dots = lax.dot_general(
        cs_ref[...],
        ds_ref[...],
        dimension_numbers=(((1,), (1,)), ((), ())),
        preferred_element_type=jnp.float32,
    )  # (tn, tm)

    cost = cs_sq_ref[...] + ds_sq_ref[...] - 2.0 * dots
    # Clamp: the expanded formulation can produce tiny negative values for
    # near-identical vectors (catastrophic cancellation).
    out_ref[...] = jnp.maximum(cost, 0.0).astype(out_ref.dtype)


@functools.partial(jax.jit, static_argnames=("tile_n", "tile_m"))
def pairwise_field_cost(
    cs: jax.Array, ds: jax.Array, *, tile_n: int = 512, tile_m: int = 512
) -> jax.Array:
    """Compute the (N, M) pairwise squared-Euclidean cost matrix with Pallas."""
    N, D = cs.shape
    M, D2 = ds.shape
    assert D == D2, "candidate / detection feature dims must match"

    # Empty tracklet / detection set: nothing to assign.
    if N == 0 or M == 0:
        return jnp.zeros((N, M), dtype=jnp.float32)

    # Tile sizes: either the full dim (legal block regardless of alignment) or
    # a sublane/lane-aligned tile (8 / 128 multiples).  No input padding — the
    # cdiv grid plus masked edge output blocks handle remainders; garbage rows
    # in partial input blocks only feed masked (dropped) output rows/cols.
    tn = N if N <= tile_n else max(8, (tile_n // 8) * 8)
    tm = M if M <= tile_m else max(128, (tile_m // 128) * 128)
    grid = (pl.cdiv(N, tn), pl.cdiv(M, tm))

    # Squared norms precomputed once in f32 (one fused mem-bound pass that XLA
    # folds into the input read) instead of per-grid-step in the kernel.
    cs_f32 = cs.astype(jnp.float32)
    ds_f32 = ds.astype(jnp.float32)
    cs_sq = jnp.sum(cs_f32 * cs_f32, axis=-1, keepdims=True)        # (N, 1)
    ds_sq = jnp.sum(ds_f32 * ds_f32, axis=-1, keepdims=True).T      # (1, M)

    # VMEM budget: double-buffered inputs + output tile (+ headroom).  Stays
    # within v7x's 64 MiB physical VMEM at the default 512x512 tiling.
    in_itemsize = jnp.dtype(cs.dtype).itemsize
    vmem_need = 2 * ((tn + tm) * D * in_itemsize + (tn + tm) * 4 + tn * tm * 4)
    vmem_limit = int(min(max(vmem_need + (4 << 20), 16 << 20), 100 << 20))

    out = pl.pallas_call(
        _field_cost_kernel,
        out_shape=jax.ShapeDtypeStruct((N, M), jnp.float32),
        grid_spec=pltpu.PrefetchScalarGridSpec(
            num_scalar_prefetch=0,
            grid=grid,
            in_specs=[
                # N tile of candidates, full feature dim.
                pl.BlockSpec((tn, D), lambda i, j: (i, 0)),
                # M tile of detections, full feature dim.
                pl.BlockSpec((tm, D), lambda i, j: (j, 0)),
                # Precomputed squared norms.
                pl.BlockSpec((tn, 1), lambda i, j: (i, 0)),
                pl.BlockSpec((1, tm), lambda i, j: (0, j)),
            ],
            out_specs=pl.BlockSpec((tn, tm), lambda i, j: (i, j)),
        ),
        compiler_params=pltpu.CompilerParams(
            # No cross-step dependency remains, so both axes can shard across
            # TensorCores (v7x megacore picks whichever has >= 2 tiles).
            dimension_semantics=("parallel", "parallel"),
            vmem_limit_bytes=vmem_limit,
        ),
    )(cs, ds, cs_sq, ds_sq)

    # TODO(synk): emit bf16 output (halves writeback) if the downstream
    # assignment step tolerates it; kept f32 here to match the reference.
    return out


class FieldCost:
    """JAX/Pallas port of unitrack's FieldCost.

    Only stores the field name (no learnable parameters).  `forward` extracts
    the field from both tensor-dicts and dispatches to the Pallas kernel.
    """

    def __init__(self, field: str):
        self.field = field
        self.required_fields = [field]

    def compute(self, cs: jax.Array, ds: jax.Array) -> jax.Array:
        return pairwise_field_cost(cs, ds)

    def forward(self, cs_dict: dict, ds_dict: dict) -> jax.Array:
        return self.compute(cs_dict[self.field], ds_dict[self.field])

    __call__ = forward


def _reference(cs: jax.Array, ds: jax.Array) -> jax.Array:
    diff = cs[:, None, :].astype(jnp.float32) - ds[None, :, :].astype(jnp.float32)
    return jnp.sum(diff * diff, axis=-1)


if __name__ == "__main__":
    key = jax.random.PRNGKey(0)
    k_cs, k_ds, k_cs2, k_ds2 = jax.random.split(key, 4)

    cost_module = FieldCost(field="embedding")

    # Small, single-tile path (grid == (1, 1), full-array blocks, no padding).
    N, M, D = 8, 16, 32  # candidates, detections, feature dim of the field
    cs_field = jax.random.normal(k_cs, (N, D), dtype=jnp.float32)
    ds_field = jax.random.normal(k_ds, (M, D), dtype=jnp.float32)

    out = cost_module({"embedding": cs_field}, {"embedding": ds_field})
    out = jax.block_until_ready(out)
    ref = _reference(cs_field, ds_field)
    assert out.shape == (N, M), out.shape
    assert jnp.allclose(out, ref, atol=1e-3, rtol=1e-4), float(
        jnp.max(jnp.abs(out - ref))
    )

    # Non-divisible shapes exercising the multi-tile grid + masked edge blocks.
    N2, M2, D2 = 600, 300, 20
    cs2 = jax.random.normal(k_cs2, (N2, D2), dtype=jnp.float32)
    ds2 = jax.random.normal(k_ds2, (M2, D2), dtype=jnp.float32)
    out2 = jax.block_until_ready(pairwise_field_cost(cs2, ds2))
    ref2 = _reference(cs2, ds2)
    assert out2.shape == (N2, M2), out2.shape
    assert jnp.allclose(out2, ref2, atol=1e-3, rtol=1e-4), float(
        jnp.max(jnp.abs(out2 - ref2))
    )

    print("KERNEL_OK")
</pallas_src>

<mosaic_0001>
module attributes {stable_mosaic.version = 11 : i64} {
  func.func @_field_cost_kernel(%arg0: i32, %arg1: i32, %arg2: memref<8x32xf32, #tpu.memory_space<vmem>>, %arg3: memref<16x32xf32, #tpu.memory_space<vmem>>, %arg4: memref<8x1xf32, #tpu.memory_space<vmem>>, %arg5: memref<1x16xf32, #tpu.memory_space<vmem>>, %arg6: memref<8x16xf32, #tpu.memory_space<vmem>>) attributes {dimension_semantics = [#tpu.dimension_semantics<parallel>, #tpu.dimension_semantics<parallel>], iteration_bounds = array<i64: 1, 1>, scalar_prefetch = 0 : i64, scratch_operands = 0 : i64, tpu.core_type = #tpu.core_type<tc>, window_params = [{transform_indices = @transform_0, window_bounds = array<i64: 8, 32>}, {transform_indices = @transform_1, window_bounds = array<i64: 16, 32>}, {transform_indices = @transform_2, window_bounds = array<i64: 8, 1>}, {transform_indices = @transform_3, window_bounds = array<i64: 1, 16>}, {transform_indices = @transform_4, window_bounds = array<i64: 8, 16>}]} {
    %c0 = arith.constant 0 : index
    %c0_0 = arith.constant 0 : index
    %0 = vector.load %arg2[%c0, %c0_0] : memref<8x32xf32, #tpu.memory_space<vmem>>, vector<8x32xf32>
    %c0_1 = arith.constant 0 : index
    %c0_2 = arith.constant 0 : index
    %1 = vector.load %arg3[%c0_1, %c0_2] : memref<16x32xf32, #tpu.memory_space<vmem>>, vector<16x32xf32>
    %cst = arith.constant dense<0.000000e+00> : vector<8x16xf32>
    %2 = tpu.matmul %0, %1, %cst {dimension_numbers = #tpu.dot_dimension_numbers<[1], [1], [0], [0], [0, 0, 1, 0], [], []>} : vector<8x32xf32>, vector<16x32xf32>, vector<8x16xf32> -> vector<8x16xf32>
    %c0_3 = arith.constant 0 : index
    %c0_4 = arith.constant 0 : index
    %3 = vector.load %arg4[%c0_3, %c0_4] : memref<8x1xf32, #tpu.memory_space<vmem>>, vector<8x1xf32>
    %c0_5 = arith.constant 0 : index
    %c0_6 = arith.constant 0 : index
    %4 = vector.load %arg5[%c0_5, %c0_6] : memref<1x16xf32, #tpu.memory_space<vmem>>, vector<1x16xf32>
    %5 = vector.broadcast %3 : vector<8x1xf32> to vector<8x16xf32>
    %6 = vector.broadcast %4 : vector<1x16xf32> to vector<8x16xf32>
    %7 = arith.addf %5, %6 : vector<8x16xf32>
    %cst_7 = arith.constant 2.000000e+00 : f32
    %8 = vector.broadcast %cst_7 : f32 to vector<8x16xf32>
    %9 = arith.mulf %8, %2 : vector<8x16xf32>
    %10 = arith.subf %7, %9 : vector<8x16xf32>
    %cst_8 = arith.constant 0.000000e+00 : f32
    %11 = vector.broadcast %cst_8 : f32 to vector<8x16xf32>
    %12 = arith.maximumf %10, %11 : vector<8x16xf32>
    %c0_9 = arith.constant 0 : index
    %c0_10 = arith.constant 0 : index
    %13 = vector.load %arg6[%c0_9, %c0_10] : memref<8x16xf32, #tpu.memory_space<vmem>>, vector<8x16xf32>
    tpu.vector_store %arg6[%c0_9, %c0_10], %12 {strides = array<i32>} : memref<8x16xf32, #tpu.memory_space<vmem>>, vector<8x16xf32>,
    return
  }
  func.func @transform_0(%arg0: i32, %arg1: i32) -> (i32, i32) {
    %c0_i32 = arith.constant 0 : i32
    %c0_i32_0 = arith.constant 0 : i32
    return %arg0, %c0_i32 : i32, i32
  }
  func.func @transform_1(%arg0: i32, %arg1: i32) -> (i32, i32) {
    %c0_i32 = arith.constant 0 : i32
    %c0_i32_0 = arith.constant 0 : i32
    return %arg1, %c0_i32 : i32, i32
  }
  func.func @transform_2(%arg0: i32, %arg1: i32) -> (i32, i32) {
    %c0_i32 = arith.constant 0 : i32
    %c0_i32_0 = arith.constant 0 : i32
    return %arg0, %c0_i32 : i32, i32
  }
  func.func @transform_3(%arg0: i32, %arg1: i32) -> (i32, i32) {
    %c0_i32 = arith.constant 0 : i32
    %c0_i32_0 = arith.constant 0 : i32
    return %c0_i32, %arg1 : i32, i32
  }
  func.func @transform_4(%arg0: i32, %arg1: i32) -> (i32, i32) {
    %c0_i32 = arith.constant 0 : i32
    return %arg0, %arg1 : i32, i32
  }
}

</mosaic_0001>

<llo_original>
// kernel: pairwise_field_cost.1
$region0: #{pairwise_field_cost.1}
  #allocation0 [shape = 'u32[]', space=smem, size = 0x4, offset = 0x4, fixed_abs, tag = 'smem constant byte address 0x4 - core index']
  #allocation1 [shape = 'u32[144,128]{1,0:T(1,128)}', space=vmem, size = 0x12000, scoped, tag = 'internal scratch']
  %s0 = inlined_call_operand.vmem [shape: f32[8,32], index: 0, kind: input, shape index: {}]
  %s1 = inlined_call_operand.vmem [shape: f32[16,32], index: 1, kind: input, shape index: {}]
  %s2 = inlined_call_operand.vmem [shape: f32[8,1], index: 2, kind: input, shape index: {}]
  %s3 = inlined_call_operand.vmem [shape: f32[1,16], index: 3, kind: input, shape index: {}]
  %s4 = inlined_call_operand.hbm [shape: f32[8,16], index: 4, kind: output, shape index: {}]
  %s5 = sld [smem:[#allocation0]]
  $region26: #{pairwise_field_cost.1} parent=0
    _
  %s7 = ssub.s32 1, %s5
  %s8 = scalar_select 0, %s7, %s5
  $region1: #{pairwise_field_cost.1} parent=0
    #allocation2 [shape = 'u8[4096]{0}', space=vmem, size = 0x1000, scoped, tag = 'output window, operand 0, single buffered']
    #allocation3 [shape = 's32[1]{0}', space=sflag, size = 0x4, scoped, tag = 'scoped memory for pairwise_field_cost.1']
    %9 = vsyncpa [#allocation3], 0
    // Predicated region
    $region2: #{pairwise_field_cost.1} parent=1 // pred_check
      _
    $region3: #{pairwise_field_cost.1} parent=1 // pred_check_branch
      %11 = sbr.rel (0) target = $region5
    $region4: #{pairwise_field_cost.1} parent=1 // pred_region
      _
    $region5: #{pairwise_field_cost.1} parent=1 // pred_fallthru
      _
    // Predicated region
    $region6: #{pairwise_field_cost.1} parent=1 // pred_check
      _
    $region7: #{pairwise_field_cost.1} parent=1 // pred_check_branch
      %13 = sbr.rel (0) target = $region9
    $region8: #{pairwise_field_cost.1} parent=1 // pred_region
      _
    $region9: #{pairwise_field_cost.1} parent=1 // pred_fallthru
      _
    // Predicated region
    $region10: #{pairwise_field_cost.1} parent=1 // pred_check
      _
    $region11: #{pairwise_field_cost.1} parent=1 // pred_check_branch
      %15 = sbr.rel (0) target = $region13
    $region12: #{pairwise_field_cost.1} parent=1 // pred_region
      _
    $region13: #{pairwise_field_cost.1} parent=1 // pred_fallthru
      _
    // Predicated region
    $region14: #{pairwise_field_cost.1} parent=1 // pred_check
      _
    $region15: #{pairwise_field_cost.1} parent=1 // pred_check_branch
      %17 = sbr.rel (0) target = $region17
    $region16: #{pairwise_field_cost.1} parent=1 // pred_region
      _
    $region17: #{pairwise_field_cost.1} parent=1 // pred_fallthru
      _
    %v18 = vld [vmem:[%s0] sm:$0xff]
    %v19 = vld [vmem:[%s1] sm:$0xff]
    %v20 = vld [vmem:[%s1 + $0x8] sm:$0xff]
    %vm21 = vcmask 261120
    %v23 = vsel %vm21, %v18, 0
    %v26 = vsel %vm21, %v19, 0
    %v29 = vsel %vm21, %v20, 0
    %31 = vmatprep.subr.mxu0 0.0
    %32 = vmatpush1.xpose.msra.mxu0 %v26
    %33 = vmatprep.subr.mxu0 0.0
    %34 = vmatpush1.xpose.msra.mxu0 %v29
    %35 = vmatprep.subr.mxu0 0.0
    %36 = vmatpush1.xpose.msra.mxu0 0.0
    %37 = vmatprep.subr.mxu0 0.0
    %38 = vmatpush1.xpose.msra.mxu0 0.0
    %39 = vmatprep.subr.mxu0 0.0
    %40 = vmatpush1.xpose.msra.mxu0 0.0
    %41 = vmatprep.subr.mxu0 0.0
    %42 = vmatpush1.xpose.msra.mxu0 0.0
    %43 = vmatprep.subr.mxu0 0.0
    %44 = vmatpush1.xpose.msra.mxu0 0.0
    %45 = vmatprep.subr.mxu0 0.0
    %46 = vmatpush1.xpose.msra.mxu0 0.0
    %47 = vmatprep.subr.mxu0 0.0
    %48 = vmatpush1.xpose.msra.mxu0 0.0
    %49 = vmatprep.subr.mxu0 0.0
    %50 = vmatpush1.xpose.msra.mxu0 0.0
    %51 = vmatprep.subr.mxu0 0.0
    %52 = vmatpush1.xpose.msra.mxu0 0.0
    %53 = vmatprep.subr.mxu0 0.0
    %54 = vmatpush1.xpose.msra.mxu0 0.0
    %55 = vmatprep.subr.mxu0 0.0
    %56 = vmatpush1.xpose.msra.mxu0 0.0
    %57 = vmatprep.subr.mxu0 0.0
    %58 = vmatpush1.xpose.msra.mxu0 0.0
    %59 = vmatprep.subr.mxu0 0.0
    %60 = vmatpush1.xpose.msra.mxu0 0.0
    %61 = vmatprep.subr.mxu0 0.0
    %62 = vmatpush1.xpose.msra.mxu0 0.0
    %63 = vmatprep.subr.mxu0 0.0
    %64 = vmatpush1.xpose.msra.mxu0 0.0
    %65 = vmatprep.subr.mxu0 0.0
    %66 = vmatpush1.xpose.msra.mxu0 0.0
    %67 = vmatprep.subr.mxu0 0.0
    %68 = vmatpush1.xpose.msra.mxu0 0.0
    %69 = vmatprep.subr.mxu0 0.0
    %70 = vmatpush1.xpose.msra.mxu0 0.0
    %71 = vmatprep.subr.mxu0 0.0
    %72 = vmatpush1.xpose.msra.mxu0 0.0
    %73 = vmatprep.subr.mxu0 0.0
    %74 = vmatpush1.xpose.msra.mxu0 0.0
    %75 = vmatprep.subr.mxu0 0.0
    %76 = vmatpush1.xpose.msra.mxu0 0.0
    %77 = vmatprep.subr.mxu0 0.0
    %78 = vmatpush1.xpose.msra.mxu0 0.0
    %79 = vmatprep.subr.mxu0 0.0
    %80 = vmatpush1.xpose.msra.mxu0 0.0
    %81 = vmatprep.subr.mxu0 0.0
    %82 = vmatpush1.xpose.msra.mxu0 0.0
    %83 = vmatprep.subr.mxu0 0.0
    %84 = vmatpush1.xpose.msra.mxu0 0.0
    %85 = vmatprep.subr.mxu0 0.0
    %86 = vmatpush1.xpose.msra.mxu0 0.0
    %87 = vmatprep.subr.mxu0 0.0
    %88 = vmatpush1.xpose.msra.mxu0 0.0
    %89 = vmatprep.subr.mxu0 0.0
    %90 = vmatpush1.xpose.msra.mxu0 0.0
    %91 = vmatprep.subr.mxu0 0.0
    %92 = vmatpush1.xpose.msra.mxu0 0.0
    %93 = vmatprep.subr.mxu0 0.0
    %94 = vmatpush1.xpose.msra.mxu0 0.0
    %95 = vmatprep.mubr.f32.mxu0 0.0
    %96 = vmatmul.mubr.f32.gmra.mrb[0].mxu0 %v23
    %v97 = vpop.f32.mrb[0].mxu0
    %v98 = vadd.f32 0.0, %v97
    %v99 = vpop.f32.mrb[0].mxu0
    %100 = vdwg.mxu0
    %v101 = vld [vmem:[%s2] sm:$0xff]
    %v102 = vld [vmem:[%s3] sm:$0x1]
    %104 = vset.pattern.permute.xlu0 0
    %105 = vperm.xlu0 %104, %v101
    %v106 = vpop.permute.xlu0 %105
    %v109 = vlaneseq
    %v110 = vshrl.u32 %v109, 7
    %v111 = vsub.s32 0, %v110
    %v112 = vrot.slane %v102, %v111
    %v114 = vadd.f32 %v106, %v112
    %v115 = vmul.f32 %v98, 2.0
    %v116 = vsub.f32 %v114, %v115
    %v117 = vmax.f32 %v116, 0.0
    %vm118 = vcmask 130048
    %119 = vst.msk [vmem:[#allocation2] sm:$0xff] %vm118, %v117
    // Predicated region
    $region18: #{pairwise_field_cost.1} parent=1 // pred_check
      _
    $region19: #{pairwise_field_cost.1} parent=1 // pred_check_branch
      %121 = sbr.rel (0) target = $region21
    $region20: #{pairwise_field_cost.1} parent=1 // pred_region
      %s123 = ssub.s32 128, 128
      %124 = vsyncadd [#allocation3], %s123
      %s126 = sshll.u32 [#allocation2], 4
      %s127 = int_to_ptr.vmem [resolvable:$true] %s126
      %129 = dma.vmem_to_hbm [thread:$0]  %s127, 128, %s4, [#allocation3]
    $region21: #{pairwise_field_cost.1} parent=1 // pred_fallthru
      _
    // Predicated region
    $region22: #{pairwise_field_cost.1} parent=1 // pred_check
      _
    $region23: #{pairwise_field_cost.1} parent=1 // pred_check_branch
      %131 = sbr.rel (0) target = $region25
    $region24: #{pairwise_field_cost.1} parent=1 // pred_region
      %132 = dma.done [#allocation3], 128
    $region25: #{pairwise_field_cost.1} parent=1 // pred_fallthru
      _
    %133 = vsyncpa [#allocation3], 1

</llo_original>
